<compile_context>
chip_gen: v5e
topology: v5e:2x2
jax: 0.10.0
libtpu: 0.0.40
codegen_flags: <defaults>
</compile_context>

<pallas_src>
import functools

import jax
import jax.numpy as jnp
from jax.experimental import pallas as pl
from jax.experimental.pallas import tpu as pltpu


def _round_up(a, m):
    return ((a + m - 1) // m) * m


def _default_use_bf16():
    """bf16 tanh/matmul only on chips with a bf16 VPU/EUP path (v6e, v7x)."""
    try:
        kind = jax.devices()[0].device_kind.lower()
    except Exception:
        return False
    return any(t in kind for t in ("v6", "v7", "tpu7"))


def _rawnet_kernel(x_ref, slab_ref, w2_ref, b3_ref, out_ref, *, compute_dtype):
    # x_ref:    (2, TB)  f32, batch on lanes
    # slab_ref: (Hp, 8)  f32, columns = [w1[:,0], w1[:,1], b1, b2, w3, 0, 0, 0]
    # w2_ref:   (Hp, Hp) in compute_dtype (bf16 on v6e/v7x, f32 on v5e)
    # b3_ref:   (1,)     f32 scalar in SMEM
    # out_ref:  (1, TB)  f32, lane-dense
    x0 = x_ref[0:1, :]                                     # (1, TB)
    x1 = x_ref[1:2, :]                                     # (1, TB)
    w1a = slab_ref[:, 0:1]                                 # (Hp, 1)
    w1b = slab_ref[:, 1:2]
    b1 = slab_ref[:, 2:3]
    b2 = slab_ref[:, 3:4]
    w3 = slab_ref[:, 4:5]

    # Layer 1 (fan_in = 2): two broadcast FMAs on the VPU, no MXU.
    pre1 = w1a * x0 + w1b * x1 + b1                        # (Hp, TB) f32
    h1 = jnp.tanh(pre1.astype(compute_dtype))              # EUP (bf16 on v6e/v7x)

    # Layer 2 (Hp x Hp): the only MXU matmul, f32 accumulation.
    pre2 = jnp.dot(w2_ref[...], h1,
                   preferred_element_type=jnp.float32) + b2
    h2 = jnp.tanh(pre2.astype(compute_dtype))              # (Hp, TB)

    # Layer 3 (fan_out = 1): elementwise multiply + sublane (XLU) reduction.
    logit = jnp.sum(w3 * h2.astype(jnp.float32), axis=0, keepdims=True) + b3_ref[0]
    out_ref[...] = jax.nn.sigmoid(logit)                   # (1, TB)


def rawnet_forward(x, params, *, tile_b=16384, use_bf16=None):
    """Forward pass of RawNet.

    x: (N, 2) float32 (torch layout) or, preferably, (2, N) float32 (zero-copy).
    params (torch-oriented layouts):
      w1: (H, 2)  b1: (H, 1)
      w2: (H, H)  b2: (H, 1)
      w3: (H, 1)  b3: (1, 1)
    Returns (N, 1) float32, matching torch RawNet.forward.
    """
    if use_bf16 is None:
        use_bf16 = _default_use_bf16()
    compute_dtype = jnp.bfloat16 if use_bf16 else jnp.float32

    # Batch must sit on the lane axis inside the kernel.  Prefer feeding (2, N)
    # directly to skip the transpose copy; a torch-style (N, 2) input is
    # transposed once (pure layout plumbing, no extra compute in the kernel).
    if x.ndim != 2:
        raise ValueError("x must be 2-D")
    if x.shape[0] == 2 and x.shape[1] != 2:
        x_t = x                                            # already (2, N)
    elif x.shape[1] == 2:
        x_t = x.T                                          # (N, 2) -> (2, N)
    else:
        raise ValueError("x must have 2 features")
    x_t = x_t.astype(jnp.float32)
    N = x_t.shape[1]

    H = params["w2"].shape[0]
    Hp = _round_up(max(H, 8), 8)                           # f32 sublane granularity

    # Pack the small resident operands into one (Hp, 8) slab.  Zero-padded rows
    # keep the math exact: padded h1/h2 rows are tanh(0)=0, padded w2 cols and
    # w3 rows are 0, so they contribute nothing to layers 2/3.
    slab = jnp.zeros((Hp, 8), jnp.float32)
    slab = slab.at[:H, 0].set(params["w1"][:, 0])
    slab = slab.at[:H, 1].set(params["w1"][:, 1])
    slab = slab.at[:H, 2].set(params["b1"][:, 0])
    slab = slab.at[:H, 3].set(params["b2"][:, 0])
    slab = slab.at[:H, 4].set(params["w3"][:, 0])
    w2p = jnp.zeros((Hp, Hp), jnp.float32).at[:H, :H].set(params["w2"])
    w2p = w2p.astype(compute_dtype)
    b3 = params["b3"].reshape((1,)).astype(jnp.float32)

    # Tile selection: as large as requested (amortizes per-step overhead), but
    # (a) no larger than needed for N and (b) small enough that the grid keeps
    # >= 2 steps so v7x's two TensorCores both get work.
    lanes = _round_up(N, 128)
    tb = min(_round_up(tile_b, 128), lanes)
    if lanes >= 256:
        tb = min(tb, _round_up(pl.cdiv(N, 2), 128))
    tb = max(128, tb)
    if tb >= N:
        tb = N                                             # single full-extent block
    grid = (pl.cdiv(N, tb),)                               # ragged last block is masked

    rep = lambda i: (0, 0)                                 # resident across batch grid

    kernel = functools.partial(_rawnet_kernel, compute_dtype=compute_dtype)
    out = pl.pallas_call(
        kernel,
        out_shape=jax.ShapeDtypeStruct((1, N), jnp.float32),
        grid=grid,
        in_specs=[
            pl.BlockSpec((2, tb), lambda i: (0, i)),       # x tile (2, TB)
            pl.BlockSpec((Hp, 8), rep),                    # packed small params
            pl.BlockSpec((Hp, Hp), rep),                   # w2
            pl.BlockSpec(memory_space=pltpu.MemorySpace.SMEM),   # b3 scalar
        ],
        out_specs=pl.BlockSpec((1, tb), lambda i: (0, i)),
        compiler_params=pltpu.CompilerParams(
            dimension_semantics=("parallel",),
            vmem_limit_bytes=32 * 1024 * 1024),
        cost_estimate=pl.CostEstimate(
            flops=int(N * (2 * Hp * Hp + 8 * Hp)),
            transcendentals=int(N * (2 * Hp + 1)),
            bytes_accessed=int(12 * N + 4 * (Hp * Hp + 8 * Hp))),
    )(x_t, slab, w2p, b3)

    # (1, N) row-major flatten is already batch order -> (N, 1).
    return out.reshape(N, 1)


def init_params(key, num_hid):
    """Mirror torch.nn.Linear's U(-1/sqrt(fan_in), +1/sqrt(fan_in)) init."""
    ks = jax.random.split(key, 6)

    def lin(kw, kb, fan_in, fan_out):
        bound = 1.0 / jnp.sqrt(float(fan_in))
        w = jax.random.uniform(kw, (fan_out, fan_in), jnp.float32, -bound, bound)
        b = jax.random.uniform(kb, (fan_out, 1), jnp.float32, -bound, bound)
        return w, b

    w1, b1 = lin(ks[0], ks[1], 2, num_hid)                 # (H, 2), (H, 1)
    w2, b2 = lin(ks[2], ks[3], num_hid, num_hid)           # (H, H), (H, 1)
    w3, b3 = lin(ks[4], ks[5], num_hid, 1)                 # (1, H), (1, 1)
    return {"w1": w1, "b1": b1, "w2": w2, "b2": b2, "w3": w3.T, "b3": b3}


def rawnet_reference(x, p):
    h1 = jnp.tanh(x @ p["w1"].T + p["b1"].T)
    h2 = jnp.tanh(h1 @ p["w2"].T + p["b2"].T)
    return jax.nn.sigmoid(h2 @ p["w3"] + p["b3"].T)


if __name__ == "__main__":
    key = jax.random.PRNGKey(0)
    k_x, k_p, k_x2, k_p3, k_x3 = jax.random.split(key, 5)

    batch, num_hid = 8, 32
    x = jax.random.normal(k_x, (batch, 2), jnp.float32)
    params = init_params(k_p, num_hid)
    ref = rawnet_reference(x, params)

    # 1) Forced f32 path, tight tolerance (valid on all chips).
    out = jax.block_until_ready(rawnet_forward(x, params, use_bf16=False))
    assert out.shape == (batch, 1)
    assert jnp.allclose(out, ref, atol=1e-5, rtol=1e-5)

    # 2) Auto path (bf16 tanh/matmul on v6e/v7x, f32 on v5e), looser tolerance.
    out_auto = jax.block_until_ready(rawnet_forward(x, params))
    assert jnp.allclose(out_auto, ref, atol=3e-2, rtol=3e-2)

    # 3) Ragged multi-step grid (exercises boundary masking, no wrapper pad) and
    #    the zero-copy (2, N) input layout.
    batch2 = 2500
    x2 = jax.random.normal(k_x2, (batch2, 2), jnp.float32)
    ref2 = rawnet_reference(x2, params)
    out2 = jax.block_until_ready(rawnet_forward(x2, params, use_bf16=False))
    assert out2.shape == (batch2, 1)
    assert jnp.allclose(out2, ref2, atol=1e-5, rtol=1e-5)
    out2b = jax.block_until_ready(rawnet_forward(x2.T, params, use_bf16=False))
    assert jnp.allclose(out2b, out2)

    # 4) Hidden size that is not a multiple of 8 (exercises the H padding path).
    params3 = init_params(k_p3, 20)
    x3 = jax.random.normal(k_x3, (300, 2), jnp.float32)
    out3 = jax.block_until_ready(rawnet_forward(x3, params3, use_bf16=False))
    assert jnp.allclose(out3, rawnet_reference(x3, params3), atol=1e-5, rtol=1e-5)

    print("KERNEL_OK")
</pallas_src>

<mosaic_0001>
module attributes {stable_mosaic.version = 11 : i64} {
  func.func @_rawnet_kernel(%arg0: i32, %arg1: memref<2x8xf32, #tpu.memory_space<vmem>>, %arg2: memref<32x8xf32, #tpu.memory_space<vmem>>, %arg3: memref<32x32xf32, #tpu.memory_space<vmem>>, %arg4: memref<1xf32, #tpu.memory_space<smem>>, %arg5: memref<1x8xf32, #tpu.memory_space<vmem>>) attributes {dimension_semantics = [#tpu.dimension_semantics<parallel>], iteration_bounds = array<i64: 1>, scalar_prefetch = 0 : i64, scratch_operands = 0 : i64, tpu.core_type = #tpu.core_type<tc>, window_params = [{transform_indices = @transform_0, window_bounds = array<i64: 2, 8>}, {pipeline_mode = #tpu.pipeline_mode<synchronous>, transform_indices = @transform_1, window_bounds = array<i64: 32, 8>}, {pipeline_mode = #tpu.pipeline_mode<synchronous>, transform_indices = @transform_2, window_bounds = array<i64: 32, 32>}, {transform_indices = @transform_3, window_bounds = array<i64: 1>}, {transform_indices = @transform_4, window_bounds = array<i64: 1, 8>}]} {
    %c0 = arith.constant 0 : index
    %c0_0 = arith.constant 0 : index
    %0 = vector.load %arg1[%c0, %c0_0] : memref<2x8xf32, #tpu.memory_space<vmem>>, vector<1x8xf32>
    %c1 = arith.constant 1 : index
    %c0_1 = arith.constant 0 : index
    %1 = vector.load %arg1[%c1, %c0_1] : memref<2x8xf32, #tpu.memory_space<vmem>>, vector<1x8xf32>
    %c0_2 = arith.constant 0 : index
    %c0_3 = arith.constant 0 : index
    %2 = vector.load %arg2[%c0_2, %c0_3] : memref<32x8xf32, #tpu.memory_space<vmem>>, vector<32x1xf32>
    %c0_4 = arith.constant 0 : index
    %c1_5 = arith.constant 1 : index
    %3 = vector.load %arg2[%c0_4, %c1_5] : memref<32x8xf32, #tpu.memory_space<vmem>>, vector<32x1xf32>
    %c0_6 = arith.constant 0 : index
    %c2 = arith.constant 2 : index
    %4 = vector.load %arg2[%c0_6, %c2] : memref<32x8xf32, #tpu.memory_space<vmem>>, vector<32x1xf32>
    %c0_7 = arith.constant 0 : index
    %c3 = arith.constant 3 : index
    %5 = vector.load %arg2[%c0_7, %c3] : memref<32x8xf32, #tpu.memory_space<vmem>>, vector<32x1xf32>
    %c0_8 = arith.constant 0 : index
    %c4 = arith.constant 4 : index
    %6 = vector.load %arg2[%c0_8, %c4] : memref<32x8xf32, #tpu.memory_space<vmem>>, vector<32x1xf32>
    %7 = vector.broadcast %2 : vector<32x1xf32> to vector<32x8xf32>
    %8 = vector.broadcast %0 : vector<1x8xf32> to vector<32x8xf32>
    %9 = arith.mulf %7, %8 : vector<32x8xf32>
    %10 = vector.broadcast %3 : vector<32x1xf32> to vector<32x8xf32>
    %11 = vector.broadcast %1 : vector<1x8xf32> to vector<32x8xf32>
    %12 = arith.mulf %10, %11 : vector<32x8xf32>
    %13 = arith.addf %9, %12 : vector<32x8xf32>
    %14 = vector.broadcast %4 : vector<32x1xf32> to vector<32x8xf32>
    %15 = arith.addf %13, %14 : vector<32x8xf32>
    %16 = math.tanh %15 : vector<32x8xf32>
    %c0_9 = arith.constant 0 : index
    %c0_10 = arith.constant 0 : index
    %17 = vector.load %arg3[%c0_9, %c0_10] : memref<32x32xf32, #tpu.memory_space<vmem>>, vector<32x32xf32>
    %cst = arith.constant dense<0.000000e+00> : vector<32x8xf32>
    %18 = tpu.matmul %17, %16, %cst {dimension_numbers = #tpu.dot_dimension_numbers<[1], [0], [0], [1], [0, 0, 1, 1], [], []>} : vector<32x32xf32>, vector<32x8xf32>, vector<32x8xf32> -> vector<32x8xf32>
    %19 = vector.broadcast %5 : vector<32x1xf32> to vector<32x8xf32>
    %20 = arith.addf %18, %19 : vector<32x8xf32>
    %21 = math.tanh %20 : vector<32x8xf32>
    %22 = vector.broadcast %6 : vector<32x1xf32> to vector<32x8xf32>
    %23 = arith.mulf %22, %21 : vector<32x8xf32>
    %cst_11 = arith.constant dense<0.000000e+00> : vector<8xf32>
    %24 = vector.multi_reduction <add>, %23, %cst_11 [0] : vector<32x8xf32> to vector<8xf32>
    %25 = vector.shape_cast %24 : vector<8xf32> to vector<1x8xf32>
    %c0_12 = arith.constant 0 : index
    %26 = memref.load %arg4[%c0_12] : memref<1xf32, #tpu.memory_space<smem>>
    %27 = vector.broadcast %26 : f32 to vector<1x8xf32>
    %28 = arith.addf %25, %27 : vector<1x8xf32>
    %29 = arith.negf %28 : vector<1x8xf32>
    %30 = math.exp %29 : vector<1x8xf32>
    %cst_13 = arith.constant 1.000000e+00 : f32
    %31 = vector.broadcast %cst_13 : f32 to vector<1x8xf32>
    %32 = arith.addf %31, %30 : vector<1x8xf32>
    %33 = arith.divf %31, %32 : vector<1x8xf32>
    %c0_14 = arith.constant 0 : index
    %c0_15 = arith.constant 0 : index
    %34 = vector.load %arg5[%c0_14, %c0_15] : memref<1x8xf32, #tpu.memory_space<vmem>>, vector<1x8xf32>
    tpu.vector_store %arg5[%c0_14, %c0_15], %33 {strides = array<i32>} : memref<1x8xf32, #tpu.memory_space<vmem>>, vector<1x8xf32>,
    return
  }
  func.func @transform_0(%arg0: i32) -> (i32, i32) {
    %c0_i32 = arith.constant 0 : i32
    %c0_i32_0 = arith.constant 0 : i32
    return %c0_i32, %arg0 : i32, i32
  }
  func.func @transform_1(%arg0: i32) -> (i32, i32) {
    %c0_i32 = arith.constant 0 : i32
    %c0_i32_0 = arith.constant 0 : i32
    %c0_i32_1 = arith.constant 0 : i32
    return %c0_i32, %c0_i32_0 : i32, i32
  }
  func.func @transform_2(%arg0: i32) -> (i32, i32) {
    %c0_i32 = arith.constant 0 : i32
    %c0_i32_0 = arith.constant 0 : i32
    %c0_i32_1 = arith.constant 0 : i32
    return %c0_i32, %c0_i32_0 : i32, i32
  }
  func.func @transform_3(%arg0: i32) -> i32 {
    %c0_i32 = arith.constant 0 : i32
    %c0_i32_0 = arith.constant 0 : i32
    return %c0_i32 : i32
  }
  func.func @transform_4(%arg0: i32) -> (i32, i32) {
    %c0_i32 = arith.constant 0 : i32
    %c0_i32_0 = arith.constant 0 : i32
    return %c0_i32, %arg0 : i32, i32
  }
}

</mosaic_0001>

<llo_original>
// kernel: tpu_custom_call.1
$region0: #{tpu_custom_call.1}
  #allocation0 [shape = 'u32[]', space=smem, size = 0x4, offset = 0x4, fixed_abs, tag = 'smem constant byte address 0x4 - core index']
  #allocation1 [shape = 'u32[72,128]{1,0:T(1,128)}', space=vmem, size = 0x9000, scoped, tag = 'internal scratch']
  #allocation2 [shape = 'f32[1]{0:T(128)S(6)}', space=smem, size = 0x200, scoped, tag = 'scoped memory for tpu_custom_call.1']
  %s0 = inlined_call_operand.vmem [shape: f32[2,8], index: 0, kind: input, shape index: {}]
  %s1 = inlined_call_operand.vmem [shape: f32[32,8], index: 1, kind: input, shape index: {}]
  %s2 = inlined_call_operand.vmem [shape: f32[32,32], index: 2, kind: input, shape index: {}]
  %s3 = inlined_call_operand.<no memory space> [shape: f32[1], index: 3, kind: input, shape index: {}]
  %s4 = inlined_call_operand.hbm [shape: f32[1,8], index: 4, kind: output, shape index: {}]
  %s5 = sld [smem:[#allocation0]]
  $region26: #{tpu_custom_call.1} parent=0
    _
  %s7 = ssub.s32 1, %s5
  %s8 = scalar_select 0, %s7, %s5
  %9 = sst [smem:[#allocation2]] %s3
  $region1: #{tpu_custom_call.1} parent=0
    #allocation3 [shape = 'u8[512]{0}', space=vmem, size = 0x400, scoped, tag = 'output window, operand 0, single buffered']
    #allocation4 [shape = 's32[1]{0}', space=sflag, size = 0x4, scoped, tag = 'scoped memory for tpu_custom_call.1']
    %10 = vsyncpa [#allocation4], 0
    // Predicated region
    $region2: #{tpu_custom_call.1} parent=1 // pred_check
      _
    $region3: #{tpu_custom_call.1} parent=1 // pred_check_branch
      %12 = sbr.rel (0) target = $region5
    $region4: #{tpu_custom_call.1} parent=1 // pred_region
      _
    $region5: #{tpu_custom_call.1} parent=1 // pred_fallthru
      _
    // Predicated region
    $region6: #{tpu_custom_call.1} parent=1 // pred_check
      _
    $region7: #{tpu_custom_call.1} parent=1 // pred_check_branch
      %14 = sbr.rel (0) target = $region9
    $region8: #{tpu_custom_call.1} parent=1 // pred_region
      _
    $region9: #{tpu_custom_call.1} parent=1 // pred_fallthru
      _
    // Predicated region
    $region10: #{tpu_custom_call.1} parent=1 // pred_check
      _
    $region11: #{tpu_custom_call.1} parent=1 // pred_check_branch
      %16 = sbr.rel (0) target = $region13
    $region12: #{tpu_custom_call.1} parent=1 // pred_region
      _
    $region13: #{tpu_custom_call.1} parent=1 // pred_fallthru
      _
    // Predicated region
    $region14: #{tpu_custom_call.1} parent=1 // pred_check
      _
    $region15: #{tpu_custom_call.1} parent=1 // pred_check_branch
      %18 = sbr.rel (0) target = $region17
    $region16: #{tpu_custom_call.1} parent=1 // pred_region
      _
    $region17: #{tpu_custom_call.1} parent=1 // pred_fallthru
      _
    %v19 = vld [vmem:[%s0] sm:$0x1]
    %v20 = vld [vmem:[%s0 + $0x1] sm:$0x1]
    %v21 = vld [vmem:[%s1] sm:$0xff]
    %v22 = vld [vmem:[%s1 + $0x8] sm:$0xff]
    %v23 = vld [vmem:[%s1 + $0x10] sm:$0xff]
    %v24 = vld [vmem:[%s1 + $0x18] sm:$0xff]
    %26 = vset.pattern.permute.xlu0 0
    %27 = vperm.xlu0 %26, %v21
    %v28 = vpop.permute.xlu0 %27
    %31 = vset.pattern.permute.xlu0 0
    %32 = vperm.xlu0 %31, %v22
    %v33 = vpop.permute.xlu0 %32
    %36 = vset.pattern.permute.xlu0 0
    %37 = vperm.xlu0 %36, %v23
    %v38 = vpop.permute.xlu0 %37
    %41 = vset.pattern.permute.xlu0 0
    %42 = vperm.xlu0 %41, %v24
    %v43 = vpop.permute.xlu0 %42
    %v45 = vperm.slane %v19, 0
    %v46 = vmul.f32 %v28, %v45
    %v47 = vmul.f32 %v33, %v45
    %v48 = vmul.f32 %v38, %v45
    %v49 = vmul.f32 %v43, %v45
    %50 = vset.pattern.permute.xlu0 1
    %51 = vperm.xlu0 %50, %v21
    %v52 = vpop.permute.xlu0 %51
    %54 = vset.pattern.permute.xlu0 1
    %55 = vperm.xlu0 %54, %v22
    %v56 = vpop.permute.xlu0 %55
    %58 = vset.pattern.permute.xlu0 1
    %59 = vperm.xlu0 %58, %v23
    %v60 = vpop.permute.xlu0 %59
    %62 = vset.pattern.permute.xlu0 1
    %63 = vperm.xlu0 %62, %v24
    %v64 = vpop.permute.xlu0 %63
    %v66 = vperm.slane %v20, 0
    %v67 = vmul.f32 %v52, %v66
    %v68 = vmul.f32 %v56, %v66
    %v69 = vmul.f32 %v60, %v66
    %v70 = vmul.f32 %v64, %v66
    %v71 = vadd.f32 %v46, %v67
    %v72 = vadd.f32 %v47, %v68
    %v73 = vadd.f32 %v48, %v69
    %v74 = vadd.f32 %v49, %v70
    %75 = vset.pattern.permute.xlu0 2
    %76 = vperm.xlu0 %75, %v21
    %v77 = vpop.permute.xlu0 %76
    %79 = vset.pattern.permute.xlu0 2
    %80 = vperm.xlu0 %79, %v22
    %v81 = vpop.permute.xlu0 %80
    %83 = vset.pattern.permute.xlu0 2
    %84 = vperm.xlu0 %83, %v23
    %v85 = vpop.permute.xlu0 %84
    %87 = vset.pattern.permute.xlu0 2
    %88 = vperm.xlu0 %87, %v24
    %v89 = vpop.permute.xlu0 %88
    %v91 = vadd.f32 %v71, %v77
    %v92 = vadd.f32 %v72, %v81
    %v93 = vadd.f32 %v73, %v85
    %v94 = vadd.f32 %v74, %v89
    %v95 = vtanh.pop %v91
    %v96 = vtanh.pop %v92
    %v97 = vtanh.pop %v93
    %v98 = vtanh.pop %v94
    %v99 = vld [vmem:[%s2] sm:$0xff]
    %v100 = vld [vmem:[%s2 + $0x8] sm:$0xff]
    %v101 = vld [vmem:[%s2 + $0x10] sm:$0xff]
    %v102 = vld [vmem:[%s2 + $0x18] sm:$0xff]
    %103 = vset.pattern.permute.xlu0 3
    %104 = vperm.xlu0 %103, %v21
    %v105 = vpop.permute.xlu0 %104
    %107 = vset.pattern.permute.xlu0 3
    %108 = vperm.xlu0 %107, %v22
    %v109 = vpop.permute.xlu0 %108
    %111 = vset.pattern.permute.xlu0 3
    %112 = vperm.xlu0 %111, %v23
    %v113 = vpop.permute.xlu0 %112
    %115 = vset.pattern.permute.xlu0 3
    %116 = vperm.xlu0 %115, %v24
    %v117 = vpop.permute.xlu0 %116
    %vm119 = vcmask 261120
    %v121 = vsel %vm119, %v99, 0
    %v124 = vsel %vm119, %v100, 0
    %v127 = vsel %vm119, %v101, 0
    %v130 = vsel %vm119, %v102, 0
    %132 = vmatpush.msra.mxu0 0.0
    %133 = vmatpush.msra.mxu0 0.0
    %134 = vmatpush.msra.mxu0 0.0
    %135 = vmatpush.msra.mxu0 0.0
    %136 = vmatpush.msra.mxu0 0.0
    %137 = vmatpush.msra.mxu0 0.0
    %138 = vmatpush.msra.mxu0 0.0
    %139 = vmatpush.msra.mxu0 0.0
    %140 = vmatpush.msra.mxu0 0.0
    %141 = vmatpush.msra.mxu0 0.0
    %142 = vmatpush.msra.mxu0 0.0
    %143 = vmatpush.msra.mxu0 0.0
    %144 = vmatpush.msra.mxu0 %v98
    %145 = vmatpush.msra.mxu0 %v97
    %146 = vmatpush.msra.mxu0 %v96
    %147 = vmatpush.msra.mxu0 %v95
    %148 = vmatmul.f32.gmra.mxu0 %v121
    %v149 = vpop.f32.mrf.mxu0
    %v150 = vadd.f32 %v105, %v149
    %151 = vmatmul.f32.gmra.mxu0 %v124
    %v152 = vpop.f32.mrf.mxu0
    %v153 = vadd.f32 %v109, %v152
    %154 = vmatmul.f32.gmra.mxu0 %v127
    %v155 = vpop.f32.mrf.mxu0
    %v156 = vadd.f32 %v113, %v155
    %157 = vmatmul.f32.gmra.mxu0 %v130
    %v158 = vpop.f32.mrf.mxu0
    %v159 = vadd.f32 %v117, %v158
    %160 = vdwg.mxu0
    %v161 = vtanh.pop %v150
    %v162 = vtanh.pop %v153
    %v163 = vtanh.pop %v156
    %v164 = vtanh.pop %v159
    %165 = vset.pattern.permute.xlu0 4
    %166 = vperm.xlu0 %165, %v21
    %v167 = vpop.permute.xlu0 %166
    %169 = vset.pattern.permute.xlu0 4
    %170 = vperm.xlu0 %169, %v22
    %v171 = vpop.permute.xlu0 %170
    %173 = vset.pattern.permute.xlu0 4
    %174 = vperm.xlu0 %173, %v23
    %v175 = vpop.permute.xlu0 %174
    %177 = vset.pattern.permute.xlu0 4
    %178 = vperm.xlu0 %177, %v24
    %v179 = vpop.permute.xlu0 %178
    %v181 = vmul.f32 %v167, %v161
    %v182 = vmul.f32 %v171, %v162
    %v183 = vmul.f32 %v175, %v163
    %v184 = vmul.f32 %v179, %v164
    %vm185 = vcmask 64512
    %v186 = vsel %vm185, %v181, 0.0
    %v187 = vsel %vm185, %v182, 0.0
    %v188 = vadd.f32 %v186, %v187
    %v189 = vsel %vm185, %v183, 0.0
    %v190 = vadd.f32 %v188, %v189
    %v191 = vsel %vm185, %v184, 0.0
    %v192 = vadd.f32 %v190, %v191
    %v193 = vrot.slane %v192, 4
    %v194 = vadd.f32 %v192, %v193
    %v195 = vrot.slane %v194, 2
    %v196 = vadd.f32 %v194, %v195
    %v197 = vrot.slane %v196, 1
    %v198 = vadd.f32 %v196, %v197
    %s199 = sld [smem:[#allocation2]]
    %v200 = vstv %s199
    %v201 = vadd.f32 %v198, %v200
    %v202 = vxor.u32 %v201, 2147483648
    %v203 = vmul.f32 %v202, 1.442695
    %v204 = vpow.pop %v203
    %v205 = vadd.f32 %v204, 1.0
    %v206 = vrcp.pop %v205
    %v207 = vmul.f32 %v205, %v206
    %v208 = vsub.f32 1.0, %v207
    %v209 = vmul.f32 %v206, %v208
    %v210 = vadd.f32 %v206, %v209
    %vm211 = vweird.f32 %v205
    %vm212 = vweird.f32 %v206
    %vm213 = vmor %vm211, %vm212
    %v214 = vsel %vm213, %v206, %v210
    %v215 = vand.u32 2147483647, %v205
    %vm216 = vcmp.eq.f32.partialorder %v215, 8.507059e+37
    %v217 = vand.u32 %v205, 2147483648
    %v218 = vor.u32 1.1754944e-38, %v217
    %v219 = vsel %vm216, %v218, %v214
    %v220 = vmul.f32 1.0, %v219
    %vm221 = vcmask 57344
    %222 = vst.msk [vmem:[#allocation3] sm:$0x1] %vm221, %v220
    // Predicated region
    $region18: #{tpu_custom_call.1} parent=1 // pred_check
      _
    $region19: #{tpu_custom_call.1} parent=1 // pred_check_branch
      %224 = sbr.rel (0) target = $region21
    $region20: #{tpu_custom_call.1} parent=1 // pred_region
      %226 = vsyncadd [#allocation4], 0
      %s228 = sshll.u32 [#allocation3], 4
      %s229 = int_to_ptr.vmem [resolvable:$true] %s228
      %s230 = sshll.u32 %s4, 4
      %s231 = int_to_ptr.hbm [resolvable:$true] %s230
      %233 = dma.vmem_to_hbm [thread:$0]  %s229, 16, %s231, [#allocation4]
    $region21: #{tpu_custom_call.1} parent=1 // pred_fallthru
      _
    // Predicated region
    $region22: #{tpu_custom_call.1} parent=1 // pred_check
      _
    $region23: #{tpu_custom_call.1} parent=1 // pred_check_branch
      %235 = sbr.rel (0) target = $region25
    $region24: #{tpu_custom_call.1} parent=1 // pred_region
      %237 = dma.done [#allocation4], 16
    $region25: #{tpu_custom_call.1} parent=1 // pred_fallthru
      _
    %238 = vsyncpa [#allocation4], 1

</llo_original>
